<compile_context>
chip_gen: v7x
topology: tpu7x:2x2x1
jax: 0.10.0
libtpu: 0.0.40
codegen_flags: <defaults>
</compile_context>

<pallas_src>
import jax
import jax.numpy as jnp
from jax import lax
from jax.experimental import pallas as pl
from jax.experimental.pallas import tpu as pltpu

NEG_SLOPE = 0.01          # nn.LeakyReLU default negative_slope
_LANE = 128
_BF16 = jnp.bfloat16


def _round_up(x, m):
    return ((x + m - 1) // m) * m


def _block_diag(*mats):
    rows = sum(m.shape[0] for m in mats)
    cols = sum(m.shape[1] for m in mats)
    out = jnp.zeros((rows, cols), mats[0].dtype)
    r = c = 0
    for m in mats:
        out = out.at[r:r + m.shape[0], c:c + m.shape[1]].set(m)
        r += m.shape[0]
        c += m.shape[1]
    return out


def _vmem_budget_bytes():
    """Per-generation VMEM budget (derive limits/tiles from physical VMEM)."""
    cap = 128 * 1024 * 1024                                   # v5e/v6e parts
    try:
        cap = int(pltpu.get_tpu_info().vmem_capacity_bytes)   # 64 MiB on v7x
    except Exception:
        pass
    # ~75% of physical (headroom for double-buffering / compiler scratch),
    # capped at 100 MiB.
    return max(16 * 1024 * 1024, min((cap * 3) // 4, 100 * 1024 * 1024))


def _divisor_tile(n, target):
    """Largest 'nice' tile <= target that divides n (falls back to full extent)."""
    for c in (4096, 2048, 1024, 512, 256, 128, 64, 32, 16, 8):
        if c <= min(n, target) and n % c == 0:
            return c
    return n


# ---------------------------------------------------------------------------
# Kernel 1: fused branch linears + LeakyReLU + W1      h = LReLU(x Wblk + b) W1
# ---------------------------------------------------------------------------
def branch_w1_kernel(x_ref, wblk_ref, b_ref, w1_ref, h_ref):
    e = jnp.dot(x_ref[...], wblk_ref[...],
                preferred_element_type=jnp.float32) + b_ref[...]
    e = jnp.where(e > 0, e, NEG_SLOPE * e)                      # LeakyReLU (f32)
    h_ref[...] = jnp.dot(e.astype(_BF16), w1_ref[...],
                         preferred_element_type=jnp.float32).astype(h_ref.dtype)


# ---------------------------------------------------------------------------
# Kernel 2: zw = (adj @ h) @ W2     (row tiles "parallel", reduction "arbitrary")
# ---------------------------------------------------------------------------
def adj_h_w2_kernel(adj_ref, h_ref, w2_ref, zw_ref, acc_ref):
    k = pl.program_id(1)

    @pl.when(k == 0)
    def _():
        acc_ref[...] = jnp.zeros_like(acc_ref)

    # adj arrives f32 straight from HBM; the bf16 cast runs on the VPU and is
    # hidden under the next tile's DMA (avoids a wrapper-side cast pass).
    acc_ref[...] += jnp.dot(adj_ref[...].astype(_BF16), h_ref[...],
                            preferred_element_type=jnp.float32)

    @pl.when(k == pl.num_programs(1) - 1)
    def _():
        zw_ref[...] = jnp.dot(acc_ref[...].astype(_BF16), w2_ref[...],
                              preferred_element_type=jnp.float32).astype(zw_ref.dtype)


# ---------------------------------------------------------------------------
# Kernel 3: z_mean = adj @ zw      (also emits a bf16 copy for the decoder)
# ---------------------------------------------------------------------------
def adj_zw_kernel(adj_ref, zw_ref, z_ref, zb_ref, acc_ref):
    k = pl.program_id(1)

    @pl.when(k == 0)
    def _():
        acc_ref[...] = jnp.zeros_like(acc_ref)

    acc_ref[...] += jnp.dot(adj_ref[...].astype(_BF16), zw_ref[...],
                            preferred_element_type=jnp.float32)

    @pl.when(k == pl.num_programs(1) - 1)
    def _():
        z = acc_ref[...]
        z_ref[...] = z                                   # f32 z_mean (returned)
        zb_ref[...] = z.astype(zb_ref.dtype)             # bf16 decoder operand


# ---------------------------------------------------------------------------
# Kernel 4: decoder — recon tile (i, j) = z_rows @ z_cols^T; cluster distances
# only on the first column tile (dist block index is constant over j).
# ---------------------------------------------------------------------------
def decode_kernel(zrow_ref, zcol_ref, gam_ref, g2_ref, recon_ref, dist_ref):
    zrow_f32 = zrow_ref[...]                 # [tm, d_pad] f32 (for z^2)
    zrow = zrow_f32.astype(_BF16)            # bf16 MXU operand

    # recon[i, j] tile: contract on the last dims (no explicit transpose).
    recon_ref[...] = lax.dot_general(
        zrow, zcol_ref[...], (((1,), (1,)), ((), ())),
        preferred_element_type=jnp.float32)

    @pl.when(pl.program_id(1) == 0)
    def _():
        cross = lax.dot_general(
            zrow, gam_ref[...], (((1,), (1,)), ((), ())),
            preferred_element_type=jnp.float32)                   # [tm, k_pad]
        z2 = jnp.sum(zrow_f32 * zrow_f32, axis=1, keepdims=True)  # f32
        dist_ref[...] = jnp.maximum(z2 + g2_ref[...] - 2.0 * cross, 0.0)


# ---------------------------------------------------------------------------
# Wrapper
# ---------------------------------------------------------------------------
def cd_encoder_decoder(user_feature, adj, gamma, params, sizes, *,
                       enc_row_tile=None, enc_tile=None,
                       dec_row_tile=None, dec_col_tile=None):
    del sizes  # feature splitting is folded into the block-diagonal weight
    N, F = user_feature.shape
    q = params["wn"].shape[1]
    hidden = params["w1"].shape[0]
    out_dim = params["w2"].shape[1]
    K = gamma.shape[0]
    assert hidden == 4 * q, "embedding_dim must equal hidden_dim (as in the module)"

    h_pad = _round_up(hidden, _LANE)
    d_pad = _round_up(out_dim, _LANE)
    k_pad = _round_up(K, _LANE)

    budget = _vmem_budget_bytes()
    big_vmem = budget >= 64 * 1024 * 1024          # v5e/v6e vs v7x (64 MiB physical)
    enc_target = 1024 if big_vmem else 512          # adj tile cap
    dec_tn_target = 4096 if big_vmem else 2048      # recon column-tile cap

    tm1 = enc_row_tile or _divisor_tile(N, 512)     # kernel-1 row tile
    tt = enc_tile or _divisor_tile(N, enc_target)   # adj tiles (square)
    tmd = dec_row_tile or _divisor_tile(N, 256)     # decoder row tile
    tnd = dec_col_tile or _divisor_tile(N, dec_tn_target)
    for t in (tm1, tt, tmd, tnd):
        assert N % t == 0, "tile sizes must divide N"

    # --- fold the 4 branch Linears into one block-diagonal weight / bias, and
    # --- lane-pad hidden / out_dim / K so every intermediate is lane-dense.
    f32 = jnp.float32
    wblk = _block_diag(params["wn"], params["wc"], params["wd"], params["wt"])
    bcat = jnp.concatenate(
        [params["bn"], params["bc"], params["bd"], params["bt"]], axis=1)
    wblk_p = jnp.zeros((F, h_pad), f32).at[:, :hidden].set(wblk)
    b_p = jnp.zeros((1, h_pad), f32).at[:, :hidden].set(bcat)
    w1_p = jnp.zeros((h_pad, h_pad), f32).at[:hidden, :hidden].set(params["w1"])
    w2_p = jnp.zeros((h_pad, d_pad), f32).at[:hidden, :out_dim].set(params["w2"])
    gamma_p = jnp.zeros((k_pad, d_pad), f32).at[:K, :out_dim].set(gamma)
    g2_p = jnp.zeros((1, k_pad), f32).at[0, :K].set(jnp.sum(gamma * gamma, axis=1))

    # bf16 MXU operands (f32 accumulation).  adj deliberately stays f32 in HBM.
    x_b = user_feature.astype(_BF16)
    wblk_b, w1_b, w2_b, gamma_b = (wblk_p.astype(_BF16), w1_p.astype(_BF16),
                                   w2_p.astype(_BF16), gamma_p.astype(_BF16))

    cparams_1d = pltpu.CompilerParams(
        dimension_semantics=("parallel",), vmem_limit_bytes=budget)
    cparams_2d = pltpu.CompilerParams(
        dimension_semantics=("parallel", "arbitrary"), vmem_limit_bytes=budget)

    # ---- stage 1: h = LeakyReLU(x Wblk + b) W1  ->  [N, h_pad] bf16 ----------
    h = pl.pallas_call(
        branch_w1_kernel,
        out_shape=jax.ShapeDtypeStruct((N, h_pad), _BF16),
        grid_spec=pltpu.PrefetchScalarGridSpec(
            num_scalar_prefetch=0, grid=(N // tm1,),
            in_specs=[pl.BlockSpec((tm1, F), lambda i: (i, 0)),
                      pl.BlockSpec((F, h_pad), lambda i: (0, 0)),
                      pl.BlockSpec((1, h_pad), lambda i: (0, 0)),
                      pl.BlockSpec((h_pad, h_pad), lambda i: (0, 0))],
            out_specs=pl.BlockSpec((tm1, h_pad), lambda i: (i, 0))),
        compiler_params=cparams_1d,
    )(x_b, wblk_b, b_p, w1_b)

    # ---- stage 2: zw = (adj @ h) @ W2  ->  [N, d_pad] bf16 -------------------
    zw = pl.pallas_call(
        adj_h_w2_kernel,
        out_shape=jax.ShapeDtypeStruct((N, d_pad), _BF16),
        grid_spec=pltpu.PrefetchScalarGridSpec(
            num_scalar_prefetch=0, grid=(N // tt, N // tt),
            in_specs=[pl.BlockSpec((tt, tt), lambda i, k: (i, k)),
                      pl.BlockSpec((tt, h_pad), lambda i, k: (k, 0)),
                      pl.BlockSpec((h_pad, d_pad), lambda i, k: (0, 0))],
            out_specs=pl.BlockSpec((tt, d_pad), lambda i, k: (i, 0)),
            scratch_shapes=[pltpu.VMEM((tt, h_pad), jnp.float32)]),
        compiler_params=cparams_2d,
    )(adj, h, w2_b)

    # ---- stage 3: z_mean = adj @ zw  ->  f32 (returned) + bf16 (decoder) -----
    z_f32, z_b16 = pl.pallas_call(
        adj_zw_kernel,
        out_shape=(jax.ShapeDtypeStruct((N, d_pad), jnp.float32),
                   jax.ShapeDtypeStruct((N, d_pad), _BF16)),
        grid_spec=pltpu.PrefetchScalarGridSpec(
            num_scalar_prefetch=0, grid=(N // tt, N // tt),
            in_specs=[pl.BlockSpec((tt, tt), lambda i, k: (i, k)),
                      pl.BlockSpec((tt, d_pad), lambda i, k: (k, 0))],
            out_specs=[pl.BlockSpec((tt, d_pad), lambda i, k: (i, 0)),
                       pl.BlockSpec((tt, d_pad), lambda i, k: (i, 0))],
            scratch_shapes=[pltpu.VMEM((tt, d_pad), jnp.float32)]),
        compiler_params=cparams_2d,
    )(adj, zw)

    # ---- stage 4: decoder -> reconstructions [N,N], cluster distances [N,K] --
    recon, dist_pad = pl.pallas_call(
        decode_kernel,
        out_shape=(jax.ShapeDtypeStruct((N, N), jnp.float32),
                   jax.ShapeDtypeStruct((N, k_pad), jnp.float32)),
        grid_spec=pltpu.PrefetchScalarGridSpec(
            num_scalar_prefetch=0, grid=(N // tmd, N // tnd),
            in_specs=[pl.BlockSpec((tmd, d_pad), lambda i, j: (i, 0)),   # z rows f32
                      pl.BlockSpec((tnd, d_pad), lambda i, j: (j, 0)),   # z cols bf16
                      pl.BlockSpec((k_pad, d_pad), lambda i, j: (0, 0)),  # gamma bf16
                      pl.BlockSpec((1, k_pad), lambda i, j: (0, 0))],     # |gamma|^2 f32
            out_specs=[pl.BlockSpec((tmd, tnd), lambda i, j: (i, j)),
                       pl.BlockSpec((tmd, k_pad), lambda i, j: (i, 0))]),
        compiler_params=cparams_2d,
    )(z_f32, z_b16, gamma_b, g2_p)

    # strip the lane padding outside the kernels (pure views, free)
    return recon, dist_pad[:, :K], z_f32[:, :out_dim]


# ---------------------------------------------------------------------------
# Reference with the same mixed precision (bf16 operands, f32 accumulation
# everywhere; f32 z^2 / |gamma|^2 / combine) for validation.
# ---------------------------------------------------------------------------
def _reference(user_feature, adj, gamma, params, sizes):
    n_num, n_cat, n_des, _ = sizes
    num = user_feature[:, :n_num]
    cat = user_feature[:, n_num:n_num + n_cat]
    des = user_feature[:, n_num + n_cat:n_num + n_cat + n_des]
    twt = user_feature[:, n_num + n_cat + n_des:]

    def dot(a, b):
        return jnp.dot(a.astype(_BF16), b.astype(_BF16),
                       preferred_element_type=jnp.float32)

    def branch(x, w, b):
        y = dot(x, w) + b
        return jnp.where(y > 0, y, NEG_SLOPE * y)

    emb = jnp.concatenate([
        branch(num, params["wn"], params["bn"]),
        branch(cat, params["wc"], params["bc"]),
        branch(des, params["wd"], params["bd"]),
        branch(twt, params["wt"], params["bt"]),
    ], axis=1)
    z_hidden = dot(adj, dot(emb, params["w1"]))
    z_mean = dot(adj, dot(z_hidden, params["w2"]))

    zb = z_mean.astype(_BF16)
    gb = gamma.astype(_BF16)
    recon = jnp.dot(zb, zb.T, preferred_element_type=jnp.float32)
    z2 = jnp.sum(z_mean ** 2, axis=1, keepdims=True)
    g2 = jnp.sum(gamma ** 2, axis=1, keepdims=True).T
    dist = jnp.maximum(
        z2 + g2 - 2.0 * jnp.dot(zb, gb.T, preferred_element_type=jnp.float32), 0.0)
    return recon, dist, z_mean


def _xavier_uniform(key, fan_in, fan_out):
    lim = jnp.sqrt(6.0 / (fan_in + fan_out))
    return jax.random.uniform(key, (fan_in, fan_out), jnp.float32, -lim, lim)


def _kaiming_uniform(key, fan_in, fan_out):
    lim = jnp.sqrt(6.0 / fan_in)
    return jax.random.uniform(key, (fan_in, fan_out), jnp.float32, -lim, lim)


def _bias_uniform(key, fan_in, fan_out):
    lim = 1.0 / jnp.sqrt(fan_in)
    return jax.random.uniform(key, (1, fan_out), jnp.float32, -lim, lim)


if __name__ == "__main__":
    # Small synthetic config consistent with the module's __init__.
    N = 512                     # number of users (graph nodes)
    num_prop_size = 4
    cat_prop_size = 4
    des_size = 16
    tweet_size = 16
    embedding_dim = 32
    q = embedding_dim // 4      # per-branch embedding width = 8
    hidden_dim = embedding_dim  # weight_layer1 is [hidden, hidden]
    output_dim = 16
    K = 4                       # number of cluster centres (gamma rows)

    sizes = (num_prop_size, cat_prop_size, des_size, tweet_size)
    F = sum(sizes)

    key = jax.random.PRNGKey(0)
    keys = jax.random.split(key, 16)

    params = {
        # nn.Linear weights stored as [in, out] (kaiming uniform) + biases
        "wn": _kaiming_uniform(keys[0], num_prop_size, q),
        "bn": _bias_uniform(keys[9], num_prop_size, q),
        "wc": _kaiming_uniform(keys[1], cat_prop_size, q),
        "bc": _bias_uniform(keys[10], cat_prop_size, q),
        "wd": _kaiming_uniform(keys[2], des_size, q),
        "bd": _bias_uniform(keys[11], des_size, q),
        "wt": _kaiming_uniform(keys[3], tweet_size, q),
        "bt": _bias_uniform(keys[12], tweet_size, q),
        # GCN-style weights (xavier uniform)
        "w1": _xavier_uniform(keys[4], hidden_dim, hidden_dim),
        "w2": _xavier_uniform(keys[5], hidden_dim, output_dim),
    }

    user_feature = jax.random.normal(keys[6], (N, F), jnp.float32)
    # dense row-normalized adjacency (with self loops) standing in for the
    # sparse adj of the original module
    mask = (jax.random.uniform(keys[7], (N, N)) < 0.05).astype(jnp.float32)
    adj_raw = mask * jax.random.uniform(keys[13], (N, N)) + jnp.eye(N, dtype=jnp.float32)
    adj = adj_raw / jnp.sum(adj_raw, axis=1, keepdims=True)
    gamma = jax.random.normal(keys[8], (K, output_dim), jnp.float32)

    # Small tile overrides so the demo exercises multi-step reduction grids,
    # the pl.when init/finalize paths and the 2-D decoder column tiling.
    recon, dist, z_mean = cd_encoder_decoder(
        user_feature, adj, gamma, params, sizes,
        enc_row_tile=256, enc_tile=256, dec_row_tile=128, dec_col_tile=256)
    jax.block_until_ready((recon, dist, z_mean))

    recon_r, dist_r, z_r = _reference(user_feature, adj, gamma, params, sizes)
    assert recon.shape == (N, N) and dist.shape == (N, K) and z_mean.shape == (N, output_dim)
    # z_mean: identical mixed precision, only accumulation-order differences.
    assert jnp.allclose(z_mean, z_r, atol=1e-3, rtol=1e-3)
    # recon / dist use bf16 MXU operands in both kernel and reference; slack
    # covers one-ulp bf16 rounding flips on values near rounding boundaries.
    assert jnp.allclose(recon, recon_r, atol=5e-3, rtol=5e-3)
    assert jnp.allclose(dist, dist_r, atol=5e-3, rtol=5e-3)

    print("KERNEL_OK")
</pallas_src>

<mosaic_0001>
module attributes {stable_mosaic.version = 11 : i64} {
  func.func @branch_w1_kernel(%arg0: i32, %arg1: memref<256x40xbf16, #tpu.memory_space<vmem>>, %arg2: memref<40x128xbf16, #tpu.memory_space<vmem>>, %arg3: memref<1x128xf32, #tpu.memory_space<vmem>>, %arg4: memref<128x128xbf16, #tpu.memory_space<vmem>>, %arg5: memref<256x128xbf16, #tpu.memory_space<vmem>>) attributes {dimension_semantics = [#tpu.dimension_semantics<parallel>], iteration_bounds = array<i64: 2>, scalar_prefetch = 0 : i64, scratch_operands = 0 : i64, tpu.core_type = #tpu.core_type<tc>, window_params = [{transform_indices = @transform_0, window_bounds = array<i64: 256, 40>}, {pipeline_mode = #tpu.pipeline_mode<synchronous>, transform_indices = @transform_1, window_bounds = array<i64: 40, 128>}, {pipeline_mode = #tpu.pipeline_mode<synchronous>, transform_indices = @transform_2, window_bounds = array<i64: 1, 128>}, {pipeline_mode = #tpu.pipeline_mode<synchronous>, transform_indices = @transform_3, window_bounds = array<i64: 128, 128>}, {transform_indices = @transform_4, window_bounds = array<i64: 256, 128>}]} {
    %c0 = arith.constant 0 : index
    %c0_0 = arith.constant 0 : index
    %0 = vector.load %arg1[%c0, %c0_0] : memref<256x40xbf16, #tpu.memory_space<vmem>>, vector<256x40xbf16>
    %c0_1 = arith.constant 0 : index
    %c0_2 = arith.constant 0 : index
    %1 = vector.load %arg2[%c0_1, %c0_2] : memref<40x128xbf16, #tpu.memory_space<vmem>>, vector<40x128xbf16>
    %cst = arith.constant dense<0.000000e+00> : vector<256x128xf32>
    %2 = tpu.matmul %0, %1, %cst {dimension_numbers = #tpu.dot_dimension_numbers<[1], [0], [0], [1], [0, 0, 1, 1], [], []>} : vector<256x40xbf16>, vector<40x128xbf16>, vector<256x128xf32> -> vector<256x128xf32>
    %c0_3 = arith.constant 0 : index
    %c0_4 = arith.constant 0 : index
    %3 = vector.load %arg3[%c0_3, %c0_4] : memref<1x128xf32, #tpu.memory_space<vmem>>, vector<1x128xf32>
    %4 = vector.broadcast %3 : vector<1x128xf32> to vector<256x128xf32>
    %5 = arith.addf %2, %4 : vector<256x128xf32>
    %cst_5 = arith.constant 0.000000e+00 : f32
    %6 = vector.broadcast %cst_5 : f32 to vector<256x128xf32>
    %7 = arith.cmpf ogt, %5, %6 : vector<256x128xf32>
    %cst_6 = arith.constant 0.00999999977 : f32
    %8 = vector.broadcast %cst_6 : f32 to vector<256x128xf32>
    %9 = arith.mulf %8, %5 : vector<256x128xf32>
    %10 = arith.select %7, %5, %9 : vector<256x128xi1>, vector<256x128xf32>
    %11 = arith.truncf %10 : vector<256x128xf32> to vector<256x128xbf16>
    %c0_7 = arith.constant 0 : index
    %c0_8 = arith.constant 0 : index
    %12 = vector.load %arg4[%c0_7, %c0_8] : memref<128x128xbf16, #tpu.memory_space<vmem>>, vector<128x128xbf16>
    %cst_9 = arith.constant dense<0.000000e+00> : vector<256x128xf32>
    %13 = tpu.matmul %11, %12, %cst_9 {dimension_numbers = #tpu.dot_dimension_numbers<[1], [0], [0], [1], [0, 0, 1, 1], [], []>} : vector<256x128xbf16>, vector<128x128xbf16>, vector<256x128xf32> -> vector<256x128xf32>
    %14 = arith.truncf %13 : vector<256x128xf32> to vector<256x128xbf16>
    %c0_10 = arith.constant 0 : index
    %c0_11 = arith.constant 0 : index
    %15 = vector.load %arg5[%c0_10, %c0_11] : memref<256x128xbf16, #tpu.memory_space<vmem>>, vector<256x128xbf16>
    tpu.vector_store %arg5[%c0_10, %c0_11], %14 {strides = array<i32>} : memref<256x128xbf16, #tpu.memory_space<vmem>>, vector<256x128xbf16>,
    return
  }
  func.func @transform_0(%arg0: i32) -> (i32, i32) {
    %c0_i32 = arith.constant 0 : i32
    %c0_i32_0 = arith.constant 0 : i32
    return %arg0, %c0_i32 : i32, i32
  }
  func.func @transform_1(%arg0: i32) -> (i32, i32) {
    %c0_i32 = arith.constant 0 : i32
    %c0_i32_0 = arith.constant 0 : i32
    %c0_i32_1 = arith.constant 0 : i32
    return %c0_i32, %c0_i32_0 : i32, i32
  }
  func.func @transform_2(%arg0: i32) -> (i32, i32) {
    %c0_i32 = arith.constant 0 : i32
    %c0_i32_0 = arith.constant 0 : i32
    %c0_i32_1 = arith.constant 0 : i32
    return %c0_i32, %c0_i32_0 : i32, i32
  }
  func.func @transform_3(%arg0: i32) -> (i32, i32) {
    %c0_i32 = arith.constant 0 : i32
    %c0_i32_0 = arith.constant 0 : i32
    %c0_i32_1 = arith.constant 0 : i32
    return %c0_i32, %c0_i32_0 : i32, i32
  }
  func.func @transform_4(%arg0: i32) -> (i32, i32) {
    %c0_i32 = arith.constant 0 : i32
    %c0_i32_0 = arith.constant 0 : i32
    return %arg0, %c0_i32 : i32, i32
  }
}

</mosaic_0001>

<llo_original>
// kernel: tpu_custom_call.1
$region0: #{tpu_custom_call.1}
  #allocation0 [shape = 'u32[]', space=smem, size = 0x4, offset = 0x4, fixed_abs, tag = 'smem constant byte address 0x4 - core index']
  #allocation1 [shape = 'u32[144,128]{1,0:T(1,128)}', space=vmem, size = 0x12000, scoped, tag = 'internal scratch']
  %s0 = inlined_call_operand.hbm [shape: bf16[512,40], index: 0, kind: input, shape index: {}]
  %s1 = inlined_call_operand.hbm [shape: bf16[40,128], index: 1, kind: input, shape index: {}]
  %s2 = inlined_call_operand.hbm [shape: f32[1,128], index: 2, kind: input, shape index: {}]
  %s3 = inlined_call_operand.hbm [shape: bf16[128,128], index: 3, kind: input, shape index: {}]
  %s4 = inlined_call_operand.hbm [shape: bf16[512,128], index: 4, kind: output, shape index: {}]
  %s5 = sld [smem:[#allocation0]]
  $region65: #{tpu_custom_call.1} parent=0
    _
  %s7 = ssub.s32 1, %s5
  %s8 = scalar_select 0, %s7, %s5
  $region1: #{tpu_custom_call.1} parent=0
    #allocation2 [shape = 'u8[131072]{0}', space=vmem, size = 0x20000, scoped, tag = 'input window, operand 0']
    #allocation3 [shape = 's32[2]{0}', space=sflag, size = 0x8, scoped, tag = 'scoped memory for tpu_custom_call.1']
    #allocation4 [shape = 's32[2]{0}', space=sflag, size = 0x8, scoped, tag = 'scoped memory for tpu_custom_call.1']
    #allocation5 [shape = 'u8[10240]{0}', space=vmem, size = 0x2800, scoped, tag = 'input window, operand 1, single buffered']
    #allocation6 [shape = 's32[1]{0}', space=sflag, size = 0x4, scoped, tag = 'scoped memory for tpu_custom_call.1']
    #allocation7 [shape = 'u8[512]{0}', space=vmem, size = 0x400, scoped, tag = 'input window, operand 2, single buffered']
    #allocation8 [shape = 'u8[32768]{0}', space=vmem, size = 0x8000, scoped, tag = 'input window, operand 3, single buffered']
    #allocation9 [shape = 's32[1]{0}', space=sflag, size = 0x4, scoped, tag = 'scoped memory for tpu_custom_call.1']
    #allocation10 [shape = 'u8[131072]{0}', space=vmem, size = 0x20000, scoped, tag = 'output window, operand 0']
    %9 = vsyncpa [#allocation3], 0
    %s10 = scalar_lea.sflag [#allocation3], 1
    %11 = vsyncpa %s10, 0
    %12 = vsyncpa [#allocation6], 0
    %13 = vsyncpa [#allocation9], 0
    %14 = vsyncpa [#allocation4], 0
    %s15 = scalar_lea.sflag [#allocation4], 1
    %16 = vsyncpa %s15, 0
    loop: start=0, step=1, limit=4
    $region2: #{tpu_custom_call.1} parent=1 // loop_pre_header
      _
    $region3: #{tpu_custom_call.1} parent=1 // loop_header
      %s18 = sphi 0, %s22
      %p19 = scmp.ge.s32.totalorder %s18, 4
      %s28 = sphi 0, %s30
      %s31 = sphi 0, %s28
      %s32 = sphi 0, %s31
      %s48 = sphi 0, %s32
      %s52 = sphi 0, %s52
      %s54 = sphi 0, %s52
      %s55 = sphi 0, %s54
      %s69 = sphi 0, %s55
      %s73 = sphi 0, %s73
      %s75 = sphi 0, %s73
      %s76 = sphi 0, %s75
      %s90 = sphi 0, %s76
      %s94 = sphi 0, %s94
      %s96 = sphi 0, %s94
      %s97 = sphi 0, %s96
      %s111 = sphi 0, %s97
      %s117 = sphi 0, %s119
      %s120 = sphi 0, %s117
      %s121 = sphi 0, %s120
      %s137 = sphi 0, %s121
    $region4: #{tpu_custom_call.1} parent=1 // loop_header_branch
      %21 = sbr.rel (%p19) target = $region8
    $region5: #{tpu_custom_call.1} parent=1 // loop_body
      %s23 = ssub.s32 %s18, 1
      %s24 = ssub.s32 %s18, 2
      %s25 = sadd.s32 %s18, 1
      %s26 = ssub.s32 %s18, %s25
      %p27 = scmp.eq.s32.totalorder %s26, 0
      %s29 = sadd.s32 %s28, 1
      %s30 = scalar_select %p27, %s28, %s29
      %p33 = pneg %p27
      %p34 = scmp.eq.s32.totalorder %s18, 1
      %p35 = por %p33, %p34
      %p36 = scmp.ne.s32.totalorder %s28, %s31
      %p37 = scmp.eq.s32.totalorder %s18, 0
      %p38 = por %p36, %p37
      %p39 = scmp.ne.s32.totalorder %s28, %s31
      %p40 = scmp.eq.s32.totalorder %s23, 1
      %p41 = por %p39, %p40
      %p42 = scmp.ne.s32.totalorder %s31, %s32
      %p43 = scmp.eq.s32.totalorder %s23, 0
      %p44 = por %p42, %p43
      %p45 = scmp.ne.s32.totalorder %s31, %s32
      %p46 = scmp.eq.s32.totalorder %s24, 1
      %p47 = por %p45, %p46
      %p49 = scmp.ne.s32.totalorder %s32, %s48
      %p50 = scmp.eq.s32.totalorder %s24, 0
      %p51 = por %p49, %p50
      %s53 = sadd.s32 %s52, 1
      %p56 = scmp.eq.s32.totalorder %s18, 1
      %p57 = scmp.ne.s32.totalorder %s52, %s54
      %p58 = scmp.eq.s32.totalorder %s18, 0
      %p59 = por %p57, %p58
      %p60 = scmp.ne.s32.totalorder %s52, %s54
      %p61 = scmp.eq.s32.totalorder %s23, 1
      %p62 = por %p60, %p61
      %p63 = scmp.ne.s32.totalorder %s54, %s55
      %p64 = scmp.eq.s32.totalorder %s23, 0
      %p65 = por %p63, %p64
      %p66 = scmp.ne.s32.totalorder %s54, %s55
      %p67 = scmp.eq.s32.totalorder %s24, 1
      %p68 = por %p66, %p67
      %p70 = scmp.ne.s32.totalorder %s55, %s69
      %p71 = scmp.eq.s32.totalorder %s24, 0
      %p72 = por %p70, %p71
      %s74 = sadd.s32 %s73, 1
      %p77 = scmp.eq.s32.totalorder %s18, 1
      %p78 = scmp.ne.s32.totalorder %s73, %s75
      %p79 = scmp.eq.s32.totalorder %s18, 0
      %p80 = por %p78, %p79
      %p81 = scmp.ne.s32.totalorder %s73, %s75
      %p82 = scmp.eq.s32.totalorder %s23, 1
      %p83 = por %p81, %p82
      %p84 = scmp.ne.s32.totalorder %s75, %s76
      %p85 = scmp.eq.s32.totalorder %s23, 0
      %p86 = por %p84, %p85
      %p87 = scmp.ne.s32.totalorder %s75, %s76
      %p88 = scmp.eq.s32.totalorder %s24, 1
      %p89 = por %p87, %p88
      %p91 = scmp.ne.s32.totalorder %s76, %s90
      %p92 = scmp.eq.s32.totalorder %s24, 0
      %p93 = por %p91, %p92
      %s95 = sadd.s32 %s94, 1
      %p98 = scmp.eq.s32.totalorder %s18, 1
      %p99 = scmp.ne.s32.totalorder %s94, %s96
      %p100 = scmp.eq.s32.totalorder %s18, 0
      %p101 = por %p99, %p100
      %p102 = scmp.ne.s32.totalorder %s94, %s96
      %p103 = scmp.eq.s32.totalorder %s23, 1
      %p104 = por %p102, %p103
      %p105 = scmp.ne.s32.totalorder %s96, %s97
      %p106 = scmp.eq.s32.totalorder %s23, 0
      %p107 = por %p105, %p106
      %p108 = scmp.ne.s32.totalorder %s96, %s97
      %p109 = scmp.eq.s32.totalorder %s24, 1
      %p110 = por %p108, %p109
      %p112 = scmp.ne.s32.totalorder %s97, %s111
      %p113 = scmp.eq.s32.totalorder %s24, 0
      %p114 = por %p112, %p113
      %s115 = ssub.s32 %s18, %s25
      %p116 = scmp.eq.s32.totalorder %s115, 0
      %s118 = sadd.s32 %s117, 1
      %s119 = scalar_select %p116, %s117, %s118
      %p122 = pneg %p116
      %p123 = scmp.eq.s32.totalorder %s18, 1
      %p124 = por %p122, %p123
      %p125 = scmp.ne.s32.totalorder %s117, %s120
      %p126 = scmp.eq.s32.totalorder %s18, 0
      %p127 = por %p125, %p126
      %p128 = scmp.ne.s32.totalorder %s117, %s120
      %p129 = scmp.eq.s32.totalorder %s23, 1
      %p130 = por %p128, %p129
      %p131 = scmp.ne.s32.totalorder %s120, %s121
      %p132 = scmp.eq.s32.totalorder %s23, 0
      %p133 = por %p131, %p132
      %p134 = scmp.ne.s32.totalorder %s120, %s121
      %p135 = scmp.eq.s32.totalorder %s24, 1
      %p136 = por %p134, %p135
      %p138 = scmp.ne.s32.totalorder %s121, %s137
      %p139 = scmp.eq.s32.totalorder %s24, 0
      %p140 = por %p138, %p139
      %p141 = scmp.le.s32.totalorder 1, %s18
      %p142 = scmp.lt.s32.totalorder %s18, 3
      %p143 = pnand %p141, %p142
      %p144 = pneg %p143
      // Predicated region
      $region9: #{tpu_custom_call.1} parent=5 // pred_check
        _
      $region10: #{tpu_custom_call.1} parent=5 // pred_check_branch
        %146 = sbr.rel (%p143) target = $region12
      $region11: #{tpu_custom_call.1} parent=5 // pred_region
        %s147 = ssub.s32 %s18, 1
        // Predicated region
        $region13: #{tpu_custom_call.1} parent=11 // pred_check
          %p148 = pneg %p65
        $region14: #{tpu_custom_call.1} parent=11 // pred_check_branch
          %150 = sbr.rel (%p148) target = $region16
        $region15: #{tpu_custom_call.1} parent=11 // pred_region
          %s152 = ssub.s32 320, 320
          %153 = vsyncadd [#allocation6], %s152
          %s154 = sshll.u32 [#allocation5], 4
          %s155 = int_to_ptr.vmem [resolvable:$true] %s154
          %160 = dma.hbm_to_vmem [thread:$0]  %s1, 320, %s155, [#allocation6], 64, 64, 4
        $region16: #{tpu_custom_call.1} parent=11 // pred_fallthru
          _
        // Predicated region
        $region17: #{tpu_custom_call.1} parent=11 // pred_check
          %p161 = pneg %p86
        $region18: #{tpu_custom_call.1} parent=11 // pred_check_branch
          %163 = sbr.rel (%p161) target = $region20
        $region19: #{tpu_custom_call.1} parent=11 // pred_region
          %s165 = ssub.s32 16, 16
          %166 = vsyncadd [#allocation6], %s165
          %s168 = sshll.u32 [#allocation7], 4
          %s169 = int_to_ptr.vmem [resolvable:$true] %s168
          %171 = dma.hbm_to_vmem [thread:$0]  %s2, 16, %s169, [#allocation6]
        $region20: #{tpu_custom_call.1} parent=11 // pred_fallthru
          _
        // Predicated region
        $region21: #{tpu_custom_call.1} parent=11 // pred_check
          %p172 = pneg %p107
        $region22: #{tpu_custom_call.1} parent=11 // pred_check_branch
          %174 = sbr.rel (%p172) target = $region24
        $region23: #{tpu_custom_call.1} parent=11 // pred_region
          %s176 = ssub.s32 1024, 1024
          %177 = vsyncadd [#allocation9], %s176
          %s178 = sshll.u32 [#allocation8], 4
          %s179 = int_to_ptr.vmem [resolvable:$true] %s178
          %184 = dma.hbm_to_vmem [thread:$0]  %s3, 1024, %s179, [#allocation9], 64, 64, 4
        $region24: #{tpu_custom_call.1} parent=11 // pred_fallthru
          _
      $region12: #{tpu_custom_call.1} parent=5 // pred_fallthru
        _
      %p185 = scmp.lt.s32.totalorder %s18, 2
      // Predicated region
      $region25: #{tpu_custom_call.1} parent=5 // pred_check
        %p186 = pneg %p185
      $region26: #{tpu_custom_call.1} parent=5 // pred_check_branch
        %188 = sbr.rel (%p186) target = $region28
      $region27: #{tpu_custom_call.1} parent=5 // pred_region
        // Predicated region
        $region29: #{tpu_custom_call.1} parent=27 // pred_check
          %p189 = pneg %p38
        $region30: #{tpu_custom_call.1} parent=27 // pred_check_branch
          %191 = sbr.rel (%p189) target = $region32
        $region31: #{tpu_custom_call.1} parent=27 // pred_region
          %s192 = sand.u32 %s28, 1
          %s193 = scalar_lea.sflag [#allocation3], %s192
          %s194 = sand.u32 %s28, 1
          %s195 = smul.addr %s194, 128
          %s196 = scalar_lea.vmem [#allocation2], %s195
          %s197 = smul.u32 32, %s18
          %s199 = ssub.s32 2048, 2048
          %200 = vsyncadd %s193, %s199
          %s201 = smul.addr %s197, 64
          %s202 = scalar_lea.hbm %s0, %s201
          %s203 = sshll.u32 %s196, 4
          %s204 = int_to_ptr.vmem [resolvable:$true] %s203
          %209 = dma.hbm_to_vmem [thread:$0]  %s202, 2048, %s204, %s193, 64, 64, 4
        $region32: #{tpu_custom_call.1} parent=27 // pred_fallthru
          _
      $region28: #{tpu_custom_call.1} parent=5 // pred_fallthru
        _
      %p210 = scmp.le.s32.totalorder 1, %s18
      %p211 = scmp.lt.s32.totalorder %s18, 3
      %p212 = pnand %p210, %p211
      %p213 = pneg %p212
      // Predicated region
      $region33: #{tpu_custom_call.1} parent=5 // pred_check
        _
      $region34: #{tpu_custom_call.1} parent=5 // pred_check_branch
        %215 = sbr.rel (%p212) target = $region36
      $region35: #{tpu_custom_call.1} parent=5 // pred_region
        %s216 = ssub.s32 %s18, 1
        %s217 = sand.u32 %s31, 1
        %s218 = scalar_lea.sflag [#allocation3], %s217
        %s219 = sand.u32 %s31, 1
        %s220 = smul.addr %s219, 128
        %s221 = scalar_lea.vmem [#allocation2], %s220
        // Predicated region
        $region37: #{tpu_custom_call.1} parent=35 // pred_check
          %p222 = pneg %p44
        $region38: #{tpu_custom_call.1} parent=35 // pred_check_branch
          %224 = sbr.rel (%p222) target = $region40
        $region39: #{tpu_custom_call.1} parent=35 // pred_region
          %225 = dma.done %s218, 2048
        $region40: #{tpu_custom_call.1} parent=35 // pred_fallthru
          _
        // Predicated region
        $region41: #{tpu_custom_call.1} parent=35 // pred_check
          %p226 = pneg %p65
        $region42: #{tpu_custom_call.1} parent=35 // pred_check_branch
          %228 = sbr.rel (%p226) target = $region44
        $region43: #{tpu_custom_call.1} parent=35 // pred_region
          %229 = dma.done [#allocation6], 320
        $region44: #{tpu_custom_call.1} parent=35 // pred_fallthru
          _
        // Predicated region
        $region45: #{tpu_custom_call.1} parent=35 // pred_check
          %p230 = pneg %p86
        $region46: #{tpu_custom_call.1} parent=35 // pred_check_branch
          %232 = sbr.rel (%p230) target = $region48
        $region47: #{tpu_custom_call.1} parent=35 // pred_region
          %233 = dma.done [#allocation6], 16
        $region48: #{tpu_custom_call.1} parent=35 // pred_fallthru
          _
        // Predicated region
        $region49: #{tpu_custom_call.1} parent=35 // pred_check
          %p234 = pneg %p107
        $region50: #{tpu_custom_call.1} parent=35 // pred_check_branch
          %236 = sbr.rel (%p234) target = $region52
        $region51: #{tpu_custom_call.1} parent=35 // pred_region
          %237 = dma.done [#allocation9], 1024
        $region52: #{tpu_custom_call.1} parent=35 // pred_fallthru
          _
        %s238 = sand.u32 %s31, 1
        %s239 = scalar_lea.sflag [#allocation3], %s238
        %s240 = sand.u32 %s31, 1
        %s241 = smul.addr %s240, 128
        %s242 = scalar_lea.vmem [#allocation2], %s241
        %p243 = pneg %p44
        %p244 = pneg %p41
        %p245 = pneg %p65
        %p246 = pneg %p62
        %p247 = pneg %p86
        %p248 = pneg %p83
        %p249 = pneg %p107
        %p250 = pneg %p104
        %p251 = pneg %p133
        %p252 = pneg %p130
        %s253 = sand.u32 %s120, 1
        %s254 = scalar_lea.sflag [#allocation4], %s253
        %s255 = sand.u32 %s120, 1
        %s256 = smul.addr %s255, 128
        %s257 = scalar_lea.vmem [#allocation10], %s256
        %s258 = smul.u32 32, %s23
        %s259 = smul.u32 32, %s23
        %v261 = vld [vmem:[%s221] sm:$0xf]
        %v262 = vld [vmem:[%s221 + $0x4] sm:$0xf]
        %v263 = vld [vmem:[%s221 + $0x8] sm:$0xf]
        %v264 = vld [vmem:[%s221 + $0xc] sm:$0xf]
        %v265 = vld [vmem:[%s221 + $0x10] sm:$0xf]
        %v266 = vld [vmem:[%s221 + $0x14] sm:$0xf]
        %v267 = vld [vmem:[%s221 + $0x18] sm:$0xf]
        %v268 = vld [vmem:[%s221 + $0x1c] sm:$0xf]
        %v269 = vld [vmem:[%s221 + $0x20] sm:$0xf]
        %v270 = vld [vmem:[%s221 + $0x24] sm:$0xf]
        %v271 = vld [vmem:[%s221 + $0x28] sm:$0xf]
        %v272 = vld [vmem:[%s221 + $0x2c] sm:$0xf]
        %v273 = vld [vmem:[%s221 + $0x30] sm:$0xf]
        %v274 = vld [vmem:[%s221 + $0x34] sm:$0xf]
        %v275 = vld [vmem:[%s221 + $0x38] sm:$0xf]
        %v276 = vld [vmem:[%s221 + $0x3c] sm:$0xf]
        %v277 = vld [vmem:[%s221 + $0x40] sm:$0xf]
        %v278 = vld [vmem:[%s221 + $0x44] sm:$0xf]
        %v279 = vld [vmem:[%s221 + $0x48] sm:$0xf]
        %v280 = vld [vmem:[%s221 + $0x4c] sm:$0xf]
        %v281 = vld [vmem:[%s221 + $0x50] sm:$0xf]
        %v282 = vld [vmem:[%s221 + $0x54] sm:$0xf]
        %v283 = vld [vmem:[%s221 + $0x58] sm:$0xf]
        %v284 = vld [vmem:[%s221 + $0x5c] sm:$0xf]
        %v285 = vld [vmem:[%s221 + $0x60] sm:$0xf]
        %v286 = vld [vmem:[%s221 + $0x64] sm:$0xf]
        %v287 = vld [vmem:[%s221 + $0x68] sm:$0xf]
        %v288 = vld [vmem:[%s221 + $0x6c] sm:$0xf]
        %v289 = vld [vmem:[%s221 + $0x70] sm:$0xf]
        %v290 = vld [vmem:[%s221 + $0x74] sm:$0xf]
        %v291 = vld [vmem:[%s221 + $0x78] sm:$0xf]
        %v292 = vld [vmem:[%s221 + $0x7c] sm:$0xf]
        %v293 = vld [vmem:[#allocation5] sm:$0xf]
        %v294 = vld [vmem:[#allocation5 + $0x4] sm:$0xf]
        %v295 = vld [vmem:[#allocation5 + $0x8] sm:$0xf]
        %v296 = vld [vmem:[#allocation5 + $0xc] sm:$0xf]
        %v297 = vld [vmem:[#allocation5 + $0x10] sm:$0xf]
        %v298 = vld [vmem:[#allocation7] sm:$0x1]
        %v300 = vlaneseq
        %v301 = vshrl.u32 %v300, 7
        %v302 = vsub.s32 0, %v301
        %v303 = vrot.slane %v298, %v302
        %v337 = vunpack.c.l.b16 %v261
        %v338 = vunpack.c.l.b16 %v262
        %v339 = vunpack.c.l.b16 %v263
        %v340 = vunpack.c.l.b16 %v264
        %v341 = vunpack.c.l.b16 %v265
        %v342 = vunpack.c.l.b16 %v266
        %v343 = vunpack.c.l.b16 %v267
        %v344 = vunpack.c.l.b16 %v268
        %v345 = vunpack.c.l.b16 %v269
        %v346 = vunpack.c.l.b16 %v270
        %v347 = vunpack.c.l.b16 %v271
        %v348 = vunpack.c.l.b16 %v272
        %v349 = vunpack.c.l.b16 %v273
        %v350 = vunpack.c.l.b16 %v274
        %v351 = vunpack.c.l.b16 %v275
        %v352 = vunpack.c.l.b16 %v276
        %v353 = vunpack.c.l.b16 %v277
        %v354 = vunpack.c.l.b16 %v278
        %v355 = vunpack.c.l.b16 %v279
        %v356 = vunpack.c.l.b16 %v280
        %v357 = vunpack.c.l.b16 %v281
        %v358 = vunpack.c.l.b16 %v282
        %v359 = vunpack.c.l.b16 %v283
        %v360 = vunpack.c.l.b16 %v284
        %v361 = vunpack.c.l.b16 %v285
        %v362 = vunpack.c.l.b16 %v286
        %v363 = vunpack.c.l.b16 %v287
        %v364 = vunpack.c.l.b16 %v288
        %v365 = vunpack.c.l.b16 %v289
        %v366 = vunpack.c.l.b16 %v290
        %v367 = vunpack.c.l.b16 %v291
        %v368 = vunpack.c.l.b16 %v292
        %v369 = vpack.c.b16 %v338, %v337
        %v370 = vpack.c.b16 %v340, %v339
        %v371 = vpack.c.b16 %v342, %v341
        %v372 = vpack.c.b16 %v344, %v343
        %v373 = vpack.c.b16 %v346, %v345
        %v374 = vpack.c.b16 %v348, %v347
        %v375 = vpack.c.b16 %v350, %v349
        %v376 = vpack.c.b16 %v352, %v351
        %v377 = vpack.c.b16 %v354, %v353
        %v378 = vpack.c.b16 %v356, %v355
        %v379 = vpack.c.b16 %v358, %v357
        %v380 = vpack.c.b16 %v360, %v359
        %v381 = vpack.c.b16 %v362, %v361
        %v382 = vpack.c.b16 %v364, %v363
        %v383 = vpack.c.b16 %v366, %v365
        %v384 = vpack.c.b16 %v368, %v367
        %v390 = vunpack.c.l.b16 %v293
        %v391 = vunpack.c.l.b16 %v294
        %v392 = vunpack.c.l.b16 %v295
        %v393 = vunpack.c.l.b16 %v296
        %v394 = vunpack.c.l.b16 %v297
        %v395 = vpack.c.b16 %v391, %v390
        %v396 = vpack.c.b16 %v393, %v392
        %v397 = vpack.c.b16 %v394, %v394
        %vm400 = vcmask 326656
        %v402 = vsel %vm400, %v369, 0
        %v405 = vsel %vm400, %v370, 0
        %v408 = vsel %vm400, %v371, 0
        %v411 = vsel %vm400, %v372, 0
        %v414 = vsel %vm400, %v373, 0
        %v417 = vsel %vm400, %v374, 0
        %v420 = vsel %vm400, %v375, 0
        %v423 = vsel %vm400, %v376, 0
        %v426 = vsel %vm400, %v377, 0
        %v429 = vsel %vm400, %v378, 0
        %v432 = vsel %vm400, %v379, 0
        %v435 = vsel %vm400, %v380, 0
        %v438 = vsel %vm400, %v381, 0
        %v441 = vsel %vm400, %v382, 0
        %v444 = vsel %vm400, %v383, 0
        %v447 = vsel %vm400, %v384, 0
        %vm449 = vcmask 1043456
        %v451 = vsel %vm449, %v397, 0
        %453 = vmatprep.subr.bf16.mxu0 0
        %454 = vmatpush1.bf16.msra.mxu0 %v395
        %455 = vmatprep.subr.bf16.mxu0 0
        %456 = vmatpush1.bf16.msra.mxu0 %v396
        %457 = vmatprep.subr.bf16.mxu0 0
        %458 = vmatpush1.bf16.msra.mxu0 %v451
        %459 = vmatprep.subr.bf16.mxu0 0
        %460 = vmatpush1.bf16.msra.mxu0 0
        %461 = vmatprep.subr.bf16.mxu0 0
        %462 = vmatpush1.bf16.msra.mxu0 0
        %463 = vmatprep.subr.bf16.mxu0 0
        %464 = vmatpush1.bf16.msra.mxu0 0
        %465 = vmatprep.subr.bf16.mxu0 0
        %466 = vmatpush1.bf16.msra.mxu0 0
        %467 = vmatprep.subr.bf16.mxu0 0
        %468 = vmatpush1.bf16.msra.mxu0 0
        %469 = vmatprep.subr.bf16.mxu0 0
        %470 = vmatpush1.bf16.msra.mxu0 0
        %471 = vmatprep.subr.bf16.mxu0 0
        %472 = vmatpush1.bf16.msra.mxu0 0
        %473 = vmatprep.subr.bf16.mxu0 0
        %474 = vmatpush1.bf16.msra.mxu0 0
        %475 = vmatprep.subr.bf16.mxu0 0
        %476 = vmatpush1.bf16.msra.mxu0 0
        %477 = vmatprep.subr.bf16.mxu0 0
        %478 = vmatpush1.bf16.msra.mxu0 0
        %479 = vmatprep.subr.bf16.mxu0 0
        %480 = vmatpush1.bf16.msra.mxu0 0
        %481 = vmatprep.subr.bf16.mxu0 0
        %482 = vmatpush1.bf16.msra.mxu0 0
        %483 = vmatprep.subr.bf16.mxu0 0
        %484 = vmatpush1.bf16.msra.mxu0 0
        %485 = vmatprep.mubr.bf16.mxu0 0
        %486 = vmatmul.mubr.bf16.gmra.mrb[0].mxu0 %v402
        %v487 = vpop.f32.mrb[0].mxu0
        %v488 = vadd.f32 %v303, %v487
        %v489 = vpop.f32.mrb[0].mxu0
        %v490 = vpop.f32.mrb[0].mxu0
        %v491 = vadd.f32 %v303, %v490
        %v492 = vpop.f32.mrb[0].mxu0
        %493 = vmatprep.mubr.bf16.mxu0 0
        %494 = vmatmul.mubr.bf16.gmra.mrb[0].mxu0 %v405
        %v495 = vpop.f32.mrb[0].mxu0
        %v496 = vadd.f32 %v303, %v495
        %v497 = vpop.f32.mrb[0].mxu0
        %v498 = vpop.f32.mrb[0].mxu0
        %v499 = vadd.f32 %v303, %v498
        %v500 = vpop.f32.mrb[0].mxu0
        %501 = vmatprep.mubr.bf16.mxu0 0
        %502 = vmatmul.mubr.bf16.gmra.mrb[0].mxu0 %v408
        %v503 = vpop.f32.mrb[0].mxu0
        %v504 = vadd.f32 %v303, %v503
        %v505 = vpop.f32.mrb[0].mxu0
        %v506 = vpop.f32.mrb[0].mxu0
        %v507 = vadd.f32 %v303, %v506
        %v508 = vpop.f32.mrb[0].mxu0
        %509 = vmatprep.mubr.bf16.mxu0 0
        %510 = vmatmul.mubr.bf16.gmra.mrb[0].mxu0 %v411
        %v511 = vpop.f32.mrb[0].mxu0
        %v512 = vadd.f32 %v303, %v511
        %v513 = vpop.f32.mrb[0].mxu0
        %v514 = vpop.f32.mrb[0].mxu0
        %v515 = vadd.f32 %v303, %v514
        %v516 = vpop.f32.mrb[0].mxu0
        %517 = vmatprep.mubr.bf16.mxu0 0
        %518 = vmatmul.mubr.bf16.gmra.mrb[0].mxu0 %v414
        %v519 = vpop.f32.mrb[0].mxu0
        %v520 = vadd.f32 %v303, %v519
        %v521 = vpop.f32.mrb[0].mxu0
        %v522 = vpop.f32.mrb[0].mxu0
        %v523 = vadd.f32 %v303, %v522
        %v524 = vpop.f32.mrb[0].mxu0
        %525 = vmatprep.mubr.bf16.mxu0 0
        %526 = vmatmul.mubr.bf16.gmra.mrb[0].mxu0 %v417
        %v527 = vpop.f32.mrb[0].mxu0
        %v528 = vadd.f32 %v303, %v527
        %v529 = vpop.f32.mrb[0].mxu0
        %v530 = vpop.f32.mrb[0].mxu0
        %v531 = vadd.f32 %v303, %v530
        %v532 = vpop.f32.mrb[0].mxu0
        %533 = vmatprep.mubr.bf16.mxu0 0
        %534 = vmatmul.mubr.bf16.gmra.mrb[0].mxu0 %v420
        %v535 = vpop.f32.mrb[0].mxu0
        %v536 = vadd.f32 %v303, %v535
        %v537 = vpop.f32.mrb[0].mxu0
        %v538 = vpop.f32.mrb[0].mxu0
        %v539 = vadd.f32 %v303, %v538
        %v540 = vpop.f32.mrb[0].mxu0
        %541 = vmatprep.mubr.bf16.mxu0 0
        %542 = vmatmul.mubr.bf16.gmra.mrb[0].mxu0 %v423
        %v543 = vpop.f32.mrb[0].mxu0
        %v544 = vadd.f32 %v303, %v543
        %v545 = vpop.f32.mrb[0].mxu0
        %v546 = vpop.f32.mrb[0].mxu0
        %v547 = vadd.f32 %v303, %v546
        %v548 = vpop.f32.mrb[0].mxu0
        %549 = vmatprep.mubr.bf16.mxu0 0
        %550 = vmatmul.mubr.bf16.gmra.mrb[0].mxu0 %v426
        %v551 = vpop.f32.mrb[0].mxu0
        %v552 = vadd.f32 %v303, %v551
        %v553 = vpop.f32.mrb[0].mxu0
        %v554 = vpop.f32.mrb[0].mxu0
        %v555 = vadd.f32 %v303, %v554
        %v556 = vpop.f32.mrb[0].mxu0
        %557 = vmatprep.mubr.bf16.mxu0 0
        %558 = vmatmul.mubr.bf16.gmra.mrb[0].mxu0 %v429
        %v559 = vpop.f32.mrb[0].mxu0
        %v560 = vadd.f32 %v303, %v559
        %v561 = vpop.f32.mrb[0].mxu0
        %v562 = vpop.f32.mrb[0].mxu0
        %v563 = vadd.f32 %v303, %v562
        %v564 = vpop.f32.mrb[0].mxu0
        %565 = vmatprep.mubr.bf16.mxu0 0
        %566 = vmatmul.mubr.bf16.gmra.mrb[0].mxu0 %v432
        %v567 = vpop.f32.mrb[0].mxu0
        %v568 = vadd.f32 %v303, %v567
        %v569 = vpop.f32.mrb[0].mxu0
        %v570 = vpop.f32.mrb[0].mxu0
        %v571 = vadd.f32 %v303, %v570
        %v572 = vpop.f32.mrb[0].mxu0
        %573 = vmatprep.mubr.bf16.mxu0 0
        %574 = vmatmul.mubr.bf16.gmra.mrb[0].mxu0 %v435
        %v575 = vpop.f32.mrb[0].mxu0
        %v576 = vadd.f32 %v303, %v575
        %v577 = vpop.f32.mrb[0].mxu0
        %v578 = vpop.f32.mrb[0].mxu0
        %v579 = vadd.f32 %v303, %v578
        %v580 = vpop.f32.mrb[0].mxu0
        %581 = vmatprep.mubr.bf16.mxu0 0
        %582 = vmatmul.mubr.bf16.gmra.mrb[0].mxu0 %v438
        %v583 = vpop.f32.mrb[0].mxu0
        %v584 = vadd.f32 %v303, %v583
        %v585 = vpop.f32.mrb[0].mxu0
        %v586 = vpop.f32.mrb[0].mxu0
        %v587 = vadd.f32 %v303, %v586
        %v588 = vpop.f32.mrb[0].mxu0
        %589 = vmatprep.mubr.bf16.mxu0 0
        %590 = vmatmul.mubr.bf16.gmra.mrb[0].mxu0 %v441
        %v591 = vpop.f32.mrb[0].mxu0
        %v592 = vadd.f32 %v303, %v591
        %v593 = vpop.f32.mrb[0].mxu0
        %v594 = vpop.f32.mrb[0].mxu0
        %v595 = vadd.f32 %v303, %v594
        %v596 = vpop.f32.mrb[0].mxu0
        %597 = vmatprep.mubr.bf16.mxu0 0
        %598 = vmatmul.mubr.bf16.gmra.mrb[0].mxu0 %v444
        %v599 = vpop.f32.mrb[0].mxu0
        %v600 = vadd.f32 %v303, %v599
        %v601 = vpop.f32.mrb[0].mxu0
        %v602 = vpop.f32.mrb[0].mxu0
        %v603 = vadd.f32 %v303, %v602
        %v604 = vpop.f32.mrb[0].mxu0
        %605 = vmatprep.mubr.bf16.mxu0 0
        %606 = vmatmul.mubr.bf16.gmra.mrb[0].mxu0 %v447
        %v607 = vpop.f32.mrb[0].mxu0
        %v608 = vadd.f32 %v303, %v607
        %v609 = vpop.f32.mrb[0].mxu0
        %v610 = vpop.f32.mrb[0].mxu0
        %v611 = vadd.f32 %v303, %v610
        %v612 = vpop.f32.mrb[0].mxu0
        %613 = vdwg.mxu0
        %vm614 = vcmp.gt.f32.partialorder %v488, 0.0
        %vm615 = vcmp.gt.f32.partialorder %v491, 0.0
        %vm616 = vcmp.gt.f32.partialorder %v496, 0.0
        %vm617 = vcmp.gt.f32.partialorder %v499, 0.0
        %vm618 = vcmp.gt.f32.partialorder %v504, 0.0
        %vm619 = vcmp.gt.f32.partialorder %v507, 0.0
        %vm620 = vcmp.gt.f32.partialorder %v512, 0.0
        %vm621 = vcmp.gt.f32.partialorder %v515, 0.0
        %vm622 = vcmp.gt.f32.partialorder %v520, 0.0
        %vm623 = vcmp.gt.f32.partialorder %v523, 0.0
        %vm624 = vcmp.gt.f32.partialorder %v528, 0.0
        %vm625 = vcmp.gt.f32.partialorder %v531, 0.0
        %vm626 = vcmp.gt.f32.partialorder %v536, 0.0
        %vm627 = vcmp.gt.f32.partialorder %v539, 0.0
        %vm628 = vcmp.gt.f32.partialorder %v544, 0.0
        %vm629 = vcmp.gt.f32.partialorder %v547, 0.0
        %vm630 = vcmp.gt.f32.partialorder %v552, 0.0
        %vm631 = vcmp.gt.f32.partialorder %v555, 0.0
        %vm632 = vcmp.gt.f32.partialorder %v560, 0.0
        %vm633 = vcmp.gt.f32.partialorder %v563, 0.0
        %vm634 = vcmp.gt.f32.partialorder %v568, 0.0
        %vm635 = vcmp.gt.f32.partialorder %v571, 0.0
        %vm636 = vcmp.gt.f32.partialorder %v576, 0.0
        %vm637 = vcmp.gt.f32.partialorder %v579, 0.0
        %vm638 = vcmp.gt.f32.partialorder %v584, 0.0
        %vm639 = vcmp.gt.f32.partialorder %v587, 0.0
        %vm640 = vcmp.gt.f32.partialorder %v592, 0.0
        %vm641 = vcmp.gt.f32.partialorder %v595, 0.0
        %vm642 = vcmp.gt.f32.partialorder %v600, 0.0
        %vm643 = vcmp.gt.f32.partialorder %v603, 0.0
        %vm644 = vcmp.gt.f32.partialorder %v608, 0.0
        %vm645 = vcmp.gt.f32.partialorder %v611, 0.0
        %v646 = vmul.f32 %v488, 0.01
        %v647 = vmul.f32 %v491, 0.01
        %v648 = vmul.f32 %v496, 0.01
        %v649 = vmul.f32 %v499, 0.01
        %v650 = vmul.f32 %v504, 0.01
        %v651 = vmul.f32 %v507, 0.01
        %v652 = vmul.f32 %v512, 0.01
        %v653 = vmul.f32 %v515, 0.01
        %v654 = vmul.f32 %v520, 0.01
        %v655 = vmul.f32 %v523, 0.01
        %v656 = vmul.f32 %v528, 0.01
        %v657 = vmul.f32 %v531, 0.01
        %v658 = vmul.f32 %v536, 0.01
        %v659 = vmul.f32 %v539, 0.01
        %v660 = vmul.f32 %v544, 0.01
        %v661 = vmul.f32 %v547, 0.01
        %v662 = vmul.f32 %v552, 0.01
        %v663 = vmul.f32 %v555, 0.01
        %v664 = vmul.f32 %v560, 0.01
        %v665 = vmul.f32 %v563, 0.01
        %v666 = vmul.f32 %v568, 0.01
        %v667 = vmul.f32 %v571, 0.01
        %v668 = vmul.f32 %v576, 0.01
        %v669 = vmul.f32 %v579, 0.01
        %v670 = vmul.f32 %v584, 0.01
        %v671 = vmul.f32 %v587, 0.01
        %v672 = vmul.f32 %v592, 0.01
        %v673 = vmul.f32 %v595, 0.01
        %v674 = vmul.f32 %v600, 0.01
        %v675 = vmul.f32 %v603, 0.01
        %v676 = vmul.f32 %v608, 0.01
        %v677 = vmul.f32 %v611, 0.01
        %v678 = vsel %vm614, %v488, %v646
        %v679 = vsel %vm615, %v491, %v647
        %v680 = vsel %vm616, %v496, %v648
        %v681 = vsel %vm617, %v499, %v649
        %v682 = vsel %vm618, %v504, %v650
        %v683 = vsel %vm619, %v507, %v651
        %v684 = vsel %vm620, %v512, %v652
        %v685 = vsel %vm621, %v515, %v653
        %v686 = vsel %vm622, %v520, %v654
        %v687 = vsel %vm623, %v523, %v655
        %v688 = vsel %vm624, %v528, %v656
        %v689 = vsel %vm625, %v531, %v657
        %v690 = vsel %vm626, %v536, %v658
        %v691 = vsel %vm627, %v539, %v659
        %v692 = vsel %vm628, %v544, %v660
        %v693 = vsel %vm629, %v547, %v661
        %v694 = vsel %vm630, %v552, %v662
        %v695 = vsel %vm631, %v555, %v663
        %v696 = vsel %vm632, %v560, %v664
        %v697 = vsel %vm633, %v563, %v665
        %v698 = vsel %vm634, %v568, %v666
        %v699 = vsel %vm635, %v571, %v667
        %v700 = vsel %vm636, %v576, %v668
        %v701 = vsel %vm637, %v579, %v669
        %v702 = vsel %vm638, %v584, %v670
        %v703 = vsel %vm639, %v587, %v671
        %v704 = vsel %vm640, %v592, %v672
        %v705 = vsel %vm641, %v595, %v673
        %v706 = vsel %vm642, %v600, %v674
        %v707 = vsel %vm643, %v603, %v675
        %v708 = vsel %vm644, %v608, %v676
        %v709 = vsel %vm645, %v611, %v677
        %v710 = vpack.c.bf16 %v679, %v678
        %v711 = vpack.c.bf16 %v681, %v680
        %v712 = vpack.c.bf16 %v683, %v682
        %v713 = vpack.c.bf16 %v685, %v684
        %v714 = vpack.c.bf16 %v687, %v686
        %v715 = vpack.c.bf16 %v689, %v688
        %v716 = vpack.c.bf16 %v691, %v690
        %v717 = vpack.c.bf16 %v693, %v692
        %v718 = vpack.c.bf16 %v695, %v694
        %v719 = vpack.c.bf16 %v697, %v696
        %v720 = vpack.c.bf16 %v699, %v698
        %v721 = vpack.c.bf16 %v701, %v700
        %v722 = vpack.c.bf16 %v703, %v702
        %v723 = vpack.c.bf16 %v705, %v704
        %v724 = vpack.c.bf16 %v707, %v706
        %v725 = vpack.c.bf16 %v709, %v708
        %v726 = vld [vmem:[#allocation8] sm:$0xf]
        %v727 = vld [vmem:[#allocation8 + $0x4] sm:$0xf]
        %v728 = vld [vmem:[#allocation8 + $0x8] sm:$0xf]
        %v729 = vld [vmem:[#allocation8 + $0xc] sm:$0xf]
        %v730 = vld [vmem:[#allocation8 + $0x10] sm:$0xf]
        %v731 = vld [vmem:[#allocation8 + $0x14] sm:$0xf]
        %v732 = vld [vmem:[#allocation8 + $0x18] sm:$0xf]
        %v733 = vld [vmem:[#allocation8 + $0x1c] sm:$0xf]
        %v734 = vld [vmem:[#allocation8 + $0x20] sm:$0xf]
        %v735 = vld [vmem:[#allocation8 + $0x24] sm:$0xf]
        %v736 = vld [vmem:[#allocation8 + $0x28] sm:$0xf]
        %v737 = vld [vmem:[#allocation8 + $0x2c] sm:$0xf]
        %v738 = vld [vmem:[#allocation8 + $0x30] sm:$0xf]
        %v739 = vld [vmem:[#allocation8 + $0x34] sm:$0xf]
        %v740 = vld [vmem:[#allocation8 + $0x38] sm:$0xf]
        %v741 = vld [vmem:[#allocation8 + $0x3c] sm:$0xf]
        %v758 = vunpack.c.l.b16 %v726
        %v759 = vunpack.c.l.b16 %v727
        %v760 = vunpack.c.l.b16 %v728
        %v761 = vunpack.c.l.b16 %v729
        %v762 = vunpack.c.l.b16 %v730
        %v763 = vunpack.c.l.b16 %v731
        %v764 = vunpack.c.l.b16 %v732
        %v765 = vunpack.c.l.b16 %v733
        %v766 = vunpack.c.l.b16 %v734
        %v767 = vunpack.c.l.b16 %v735
        %v768 = vunpack.c.l.b16 %v736
        %v769 = vunpack.c.l.b16 %v737
        %v770 = vunpack.c.l.b16 %v738
        %v771 = vunpack.c.l.b16 %v739
        %v772 = vunpack.c.l.b16 %v740
        %v773 = vunpack.c.l.b16 %v741
        %v774 = vpack.c.b16 %v759, %v758
        %v775 = vpack.c.b16 %v761, %v760
        %v776 = vpack.c.b16 %v763, %v762
        %v777 = vpack.c.b16 %v765, %v764
        %v778 = vpack.c.b16 %v767, %v766
        %v779 = vpack.c.b16 %v769, %v768
        %v780 = vpack.c.b16 %v771, %v770
        %v781 = vpack.c.b16 %v773, %v772
        %790 = vmatprep.subr.bf16.mxu0 0
        %791 = vmatpush1.bf16.msra.mxu0 %v774
        %792 = vmatprep.subr.bf16.mxu0 0
        %793 = vmatpush1.bf16.msra.mxu0 %v775
        %794 = vmatprep.subr.bf16.mxu0 0
        %795 = vmatpush1.bf16.msra.mxu0 %v776
        %796 = vmatprep.subr.bf16.mxu0 0
        %797 = vmatpush1.bf16.msra.mxu0 %v777
        %798 = vmatprep.subr.bf16.mxu0 0
        %799 = vmatpush1.bf16.msra.mxu0 %v778
        %800 = vmatprep.subr.bf16.mxu0 0
        %801 = vmatpush1.bf16.msra.mxu0 %v779
        %802 = vmatprep.subr.bf16.mxu0 0
        %803 = vmatpush1.bf16.msra.mxu0 %v780
        %804 = vmatprep.subr.bf16.mxu0 0
        %805 = vmatpush1.bf16.msra.mxu0 %v781
        %806 = vmatprep.subr.bf16.mxu0 0
        %807 = vmatpush1.bf16.msra.mxu0 0
        %808 = vmatprep.subr.bf16.mxu0 0
        %809 = vmatpush1.bf16.msra.mxu0 0
        %810 = vmatprep.subr.bf16.mxu0 0
        %811 = vmatpush1.bf16.msra.mxu0 0
        %812 = vmatprep.subr.bf16.mxu0 0
        %813 = vmatpush1.bf16.msra.mxu0 0
        %814 = vmatprep.subr.bf16.mxu0 0
        %815 = vmatpush1.bf16.msra.mxu0 0
        %816 = vmatprep.subr.bf16.mxu0 0
        %817 = vmatpush1.bf16.msra.mxu0 0
        %818 = vmatprep.subr.bf16.mxu0 0
        %819 = vmatpush1.bf16.msra.mxu0 0
        %820 = vmatprep.subr.bf16.mxu0 0
        %821 = vmatpush1.bf16.msra.mxu0 0
        %822 = vmatprep.mubr.bf16.mxu0 0
        %823 = vmatmul.mubr.bf16.gmra.mrb[0].mxu0 %v710
        %v824 = vpop.f32.mrb[0].mxu0
        %v825 = vadd.f32 0.0, %v824
        %v826 = vpop.f32.mrb[0].mxu0
        %v827 = vpop.f32.mrb[0].mxu0
        %v828 = vadd.f32 0.0, %v827
        %v829 = vpop.f32.mrb[0].mxu0
        %830 = vmatprep.mubr.bf16.mxu0 0
        %831 = vmatmul.mubr.bf16.gmra.mrb[0].mxu0 %v711
        %v832 = vpop.f32.mrb[0].mxu0
        %v833 = vadd.f32 0.0, %v832
        %v834 = vpop.f32.mrb[0].mxu0
        %v835 = vpop.f32.mrb[0].mxu0
        %v836 = vadd.f32 0.0, %v835
        %v837 = vpop.f32.mrb[0].mxu0
        %838 = vmatprep.mubr.bf16.mxu0 0
        %839 = vmatmul.mubr.bf16.gmra.mrb[0].mxu0 %v712
        %v840 = vpop.f32.mrb[0].mxu0
        %v841 = vadd.f32 0.0, %v840
        %v842 = vpop.f32.mrb[0].mxu0
        %v843 = vpop.f32.mrb[0].mxu0
        %v844 = vadd.f32 0.0, %v843
        %v845 = vpop.f32.mrb[0].mxu0
        %846 = vmatprep.mubr.bf16.mxu0 0
        %847 = vmatmul.mubr.bf16.gmra.mrb[0].mxu0 %v713
        %v848 = vpop.f32.mrb[0].mxu0
        %v849 = vadd.f32 0.0, %v848
        %v850 = vpop.f32.mrb[0].mxu0
        %v851 = vpop.f32.mrb[0].mxu0
        %v852 = vadd.f32 0.0, %v851
        %v853 = vpop.f32.mrb[0].mxu0
        %854 = vmatprep.mubr.bf16.mxu0 0
        %855 = vmatmul.mubr.bf16.gmra.mrb[0].mxu0 %v714
        %v856 = vpop.f32.mrb[0].mxu0
        %v857 = vadd.f32 0.0, %v856
        %v858 = vpop.f32.mrb[0].mxu0
        %v859 = vpop.f32.mrb[0].mxu0
        %v860 = vadd.f32 0.0, %v859
        %v861 = vpop.f32.mrb[0].mxu0
        %862 = vmatprep.mubr.bf16.mxu0 0
        %863 = vmatmul.mubr.bf16.gmra.mrb[0].mxu0 %v715
        %v864 = vpop.f32.mrb[0].mxu0
        %v865 = vadd.f32 0.0, %v864
        %v866 = vpop.f32.mrb[0].mxu0
        %v867 = vpop.f32.mrb[0].mxu0
        %v868 = vadd.f32 0.0, %v867
        %v869 = vpop.f32.mrb[0].mxu0
        %870 = vmatprep.mubr.bf16.mxu0 0
        %871 = vmatmul.mubr.bf16.gmra.mrb[0].mxu0 %v716
        %v872 = vpop.f32.mrb[0].mxu0
        %v873 = vadd.f32 0.0, %v872
        %v874 = vpop.f32.mrb[0].mxu0
        %v875 = vpop.f32.mrb[0].mxu0
        %v876 = vadd.f32 0.0, %v875
        %v877 = vpop.f32.mrb[0].mxu0
        %878 = vmatprep.mubr.bf16.mxu0 0
        %879 = vmatmul.mubr.bf16.gmra.mrb[0].mxu0 %v717
        %v880 = vpop.f32.mrb[0].mxu0
        %v881 = vadd.f32 0.0, %v880
        %v882 = vpop.f32.mrb[0].mxu0
        %v883 = vpop.f32.mrb[0].mxu0
        %v884 = vadd.f32 0.0, %v883
        %v885 = vpop.f32.mrb[0].mxu0
        %886 = vmatprep.mubr.bf16.mxu0 0
        %887 = vmatmul.mubr.bf16.gmra.mrb[0].mxu0 %v718
        %v888 = vpop.f32.mrb[0].mxu0
        %v889 = vadd.f32 0.0, %v888
        %v890 = vpop.f32.mrb[0].mxu0
        %v891 = vpop.f32.mrb[0].mxu0
        %v892 = vadd.f32 0.0, %v891
        %v893 = vpop.f32.mrb[0].mxu0
        %894 = vmatprep.mubr.bf16.mxu0 0
        %895 = vmatmul.mubr.bf16.gmra.mrb[0].mxu0 %v719
        %v896 = vpop.f32.mrb[0].mxu0
        %v897 = vadd.f32 0.0, %v896
        %v898 = vpop.f32.mrb[0].mxu0
        %v899 = vpop.f32.mrb[0].mxu0
        %v900 = vadd.f32 0.0, %v899
        %v901 = vpop.f32.mrb[0].mxu0
        %902 = vmatprep.mubr.bf16.mxu0 0
        %903 = vmatmul.mubr.bf16.gmra.mrb[0].mxu0 %v720
        %v904 = vpop.f32.mrb[0].mxu0
        %v905 = vadd.f32 0.0, %v904
        %v906 = vpop.f32.mrb[0].mxu0
        %v907 = vpop.f32.mrb[0].mxu0
        %v908 = vadd.f32 0.0, %v907
        %v909 = vpop.f32.mrb[0].mxu0
        %910 = vmatprep.mubr.bf16.mxu0 0
        %911 = vmatmul.mubr.bf16.gmra.mrb[0].mxu0 %v721
        %v912 = vpop.f32.mrb[0].mxu0
        %v913 = vadd.f32 0.0, %v912
        %v914 = vpop.f32.mrb[0].mxu0
        %v915 = vpop.f32.mrb[0].mxu0
        %v916 = vadd.f32 0.0, %v915
        %v917 = vpop.f32.mrb[0].mxu0
        %918 = vmatprep.mubr.bf16.mxu0 0
        %919 = vmatmul.mubr.bf16.gmra.mrb[0].mxu0 %v722
        %v920 = vpop.f32.mrb[0].mxu0
        %v921 = vadd.f32 0.0, %v920
        %v922 = vpop.f32.mrb[0].mxu0
        %v923 = vpop.f32.mrb[0].mxu0
        %v924 = vadd.f32 0.0, %v923
        %v925 = vpop.f32.mrb[0].mxu0
        %926 = vmatprep.mubr.bf16.mxu0 0
        %927 = vmatmul.mubr.bf16.gmra.mrb[0].mxu0 %v723
        %v928 = vpop.f32.mrb[0].mxu0
        %v929 = vadd.f32 0.0, %v928
        %v930 = vpop.f32.mrb[0].mxu0
        %v931 = vpop.f32.mrb[0].mxu0
        %v932 = vadd.f32 0.0, %v931
        %v933 = vpop.f32.mrb[0].mxu0
        %934 = vmatprep.mubr.bf16.mxu0 0
        %935 = vmatmul.mubr.bf16.gmra.mrb[0].mxu0 %v724
        %v936 = vpop.f32.mrb[0].mxu0
        %v937 = vadd.f32 0.0, %v936
        %v938 = vpop.f32.mrb[0].mxu0
        %v939 = vpop.f32.mrb[0].mxu0
        %v940 = vadd.f32 0.0, %v939
        %v941 = vpop.f32.mrb[0].mxu0
        %942 = vmatprep.mubr.bf16.mxu0 0
        %943 = vmatmul.mubr.bf16.gmra.mrb[0].mxu0 %v725
        %v944 = vpop.f32.mrb[0].mxu0
        %v945 = vadd.f32 0.0, %v944
        %v946 = vpop.f32.mrb[0].mxu0
        %v947 = vpop.f32.mrb[0].mxu0
        %v948 = vadd.f32 0.0, %v947
        %v949 = vpop.f32.mrb[0].mxu0
        %950 = vdwg.mxu0
        %v951 = vpack.c.bf16 %v828, %v825
        %v952 = vpack.c.bf16 %v836, %v833
        %v953 = vpack.c.bf16 %v844, %v841
        %v954 = vpack.c.bf16 %v852, %v849
        %v955 = vpack.c.bf16 %v860, %v857
        %v956 = vpack.c.bf16 %v868, %v865
        %v957 = vpack.c.bf16 %v876, %v873
        %v958 = vpack.c.bf16 %v884, %v881
        %v959 = vpack.c.bf16 %v892, %v889
        %v960 = vpack.c.bf16 %v900, %v897
        %v961 = vpack.c.bf16 %v908, %v905
        %v962 = vpack.c.bf16 %v916, %v913
        %v963 = vpack.c.bf16 %v924, %v921
        %v964 = vpack.c.bf16 %v932, %v929
        %v965 = vpack.c.bf16 %v940, %v937
        %v966 = vpack.c.bf16 %v948, %v945
        %v983 = vunpack.c.l.b16 %v951
        %v984 = vunpack.c.h.b16 %v951
        %v985 = vunpack.c.l.b16 %v952
        %v986 = vunpack.c.h.b16 %v952
        %v987 = vunpack.c.l.b16 %v953
        %v988 = vunpack.c.h.b16 %v953
        %v989 = vunpack.c.l.b16 %v954
        %v990 = vunpack.c.h.b16 %v954
        %v991 = vunpack.c.l.b16 %v955
        %v992 = vunpack.c.h.b16 %v955
        %v993 = vunpack.c.l.b16 %v956
        %v994 = vunpack.c.h.b16 %v956
        %v995 = vunpack.c.l.b16 %v957
        %v996 = vunpack.c.h.b16 %v957
        %v997 = vunpack.c.l.b16 %v958
        %v998 = vunpack.c.h.b16 %v958
        %v999 = vunpack.c.l.b16 %v959
        %v1000 = vunpack.c.h.b16 %v959
        %v1001 = vunpack.c.l.b16 %v960
        %v1002 = vunpack.c.h.b16 %v960
        %v1003 = vunpack.c.l.b16 %v961
        %v1004 = vunpack.c.h.b16 %v961
        %v1005 = vunpack.c.l.b16 %v962
        %v1006 = vunpack.c.h.b16 %v962
        %v1007 = vunpack.c.l.b16 %v963
        %v1008 = vunpack.c.h.b16 %v963
        %v1009 = vunpack.c.l.b16 %v964
        %v1010 = vunpack.c.h.b16 %v964
        %v1011 = vunpack.c.l.b16 %v965
        %v1012 = vunpack.c.h.b16 %v965
        %v1013 = vunpack.c.l.b16 %v966
        %v1014 = vunpack.c.h.b16 %v966
        %v1015 = vpack.c.b16 %v983, %v983
        %v1016 = vpack.c.b16 %v984, %v984
        %v1017 = vpack.c.b16 %v985, %v985
        %v1018 = vpack.c.b16 %v986, %v986
        %v1019 = vpack.c.b16 %v987, %v987
        %v1020 = vpack.c.b16 %v988, %v988
        %v1021 = vpack.c.b16 %v989, %v989
        %v1022 = vpack.c.b16 %v990, %v990
        %v1023 = vpack.c.b16 %v991, %v991
        %v1024 = vpack.c.b16 %v992, %v992
        %v1025 = vpack.c.b16 %v993, %v993
        %v1026 = vpack.c.b16 %v994, %v994
        %v1027 = vpack.c.b16 %v995, %v995
        %v1028 = vpack.c.b16 %v996, %v996
        %v1029 = vpack.c.b16 %v997, %v997
        %v1030 = vpack.c.b16 %v998, %v998
        %v1031 = vpack.c.b16 %v999, %v999
        %v1032 = vpack.c.b16 %v1000, %v1000
        %v1033 = vpack.c.b16 %v1001, %v1001
        %v1034 = vpack.c.b16 %v1002, %v1002
        %v1035 = vpack.c.b16 %v1003, %v1003
        %v1036 = vpack.c.b16 %v1004, %v1004
        %v1037 = vpack.c.b16 %v1005, %v1005
        %v1038 = vpack.c.b16 %v1006, %v1006
        %v1039 = vpack.c.b16 %v1007, %v1007
        %v1040 = vpack.c.b16 %v1008, %v1008
        %v1041 = vpack.c.b16 %v1009, %v1009
        %v1042 = vpack.c.b16 %v1010, %v1010
        %v1043 = vpack.c.b16 %v1011, %v1011
        %v1044 = vpack.c.b16 %v1012, %v1012
        %v1045 = vpack.c.b16 %v1013, %v1013
        %v1046 = vpack.c.b16 %v1014, %v1014
        %1079 = vst [vmem:[%s257] sm:$0xf] %v1015
        %1080 = vst [vmem:[%s257 + $0x4] sm:$0xf] %v1016
        %1081 = vst [vmem:[%s257 + $0x8] sm:$0xf] %v1017
        %1082 = vst [vmem:[%s257 + $0xc] sm:$0xf] %v1018
        %1083 = vst [vmem:[%s257 + $0x10] sm:$0xf] %v1019
        %1084 = vst [vmem:[%s257 + $0x14] sm:$0xf] %v1020
        %1085 = vst [vmem:[%s257 + $0x18] sm:$0xf] %v1021
        %1086 = vst [vmem:[%s257 + $0x1c] sm:$0xf] %v1022
        %1087 = vst [vmem:[%s257 + $0x20] sm:$0xf] %v1023
        %1088 = vst [vmem:[%s257 + $0x24] sm:$0xf] %v1024
        %1089 = vst [vmem:[%s257 + $0x28] sm:$0xf] %v1025
        %1090 = vst [vmem:[%s257 + $0x2c] sm:$0xf] %v1026
        %1091 = vst [vmem:[%s257 + $0x30] sm:$0xf] %v1027
        %1092 = vst [vmem:[%s257 + $0x34] sm:$0xf] %v1028
        %1093 = vst [vmem:[%s257 + $0x38] sm:$0xf] %v1029
        %1094 = vst [vmem:[%s257 + $0x3c] sm:$0xf] %v1030
        %1095 = vst [vmem:[%s257 + $0x40] sm:$0xf] %v1031
        %1096 = vst [vmem:[%s257 + $0x44] sm:$0xf] %v1032
        %1097 = vst [vmem:[%s257 + $0x48] sm:$0xf] %v1033
        %1098 = vst [vmem:[%s257 + $0x4c] sm:$0xf] %v1034
        %1099 = vst [vmem:[%s257 + $0x50] sm:$0xf] %v1035
        %1100 = vst [vmem:[%s257 + $0x54] sm:$0xf] %v1036
        %1101 = vst [vmem:[%s257 + $0x58] sm:$0xf] %v1037
        %1102 = vst [vmem:[%s257 + $0x5c] sm:$0xf] %v1038
        %1103 = vst [vmem:[%s257 + $0x60] sm:$0xf] %v1039
        %1104 = vst [vmem:[%s257 + $0x64] sm:$0xf] %v1040
        %1105 = vst [vmem:[%s257 + $0x68] sm:$0xf] %v1041
        %1106 = vst [vmem:[%s257 + $0x6c] sm:$0xf] %v1042
        %1107 = vst [vmem:[%s257 + $0x70] sm:$0xf] %v1043
        %1108 = vst [vmem:[%s257 + $0x74] sm:$0xf] %v1044
        %1109 = vst [vmem:[%s257 + $0x78] sm:$0xf] %v1045
        %1110 = vst [vmem:[%s257 + $0x7c] sm:$0xf] %v1046
        %s1111 = sand.u32 %s120, 1
        %s1112 = scalar_lea.sflag [#allocation4], %s1111
        %s1113 = sand.u32 %s120, 1
        %s1114 = smul.addr %s1113, 128
        %s1115 = scalar_lea.vmem [#allocation10], %s1114
        // Predicated region
        $region53: #{tpu_custom_call.1} parent=35 // pred_check
          %p1116 = pneg %p130
        $region54: #{tpu_custom_call.1} parent=35 // pred_check_branch
          %1118 = sbr.rel (%p1116) target = $region56
        $region55: #{tpu_custom_call.1} parent=35 // pred_region
          %s1119 = smul.u32 32, %s23
          %s1121 = ssub.s32 2048, 2048
          %1122 = vsyncadd %s1112, %s1121
          %s1123 = smul.addr %s1119, 64
          %s1124 = scalar_lea.hbm %s4, %s1123
          %s1125 = sshll.u32 %s1115, 4
          %s1126 = int_to_ptr.vmem [resolvable:$true] %s1125
          %1131 = dma.vmem_to_hbm [thread:$0]  %s1126, 2048, %s1124, %s1112, 64, 64, 4
        $region56: #{tpu_custom_call.1} parent=35 // pred_fallthru
          _
      $region36: #{tpu_custom_call.1} parent=5 // pred_fallthru
        _
      %p1132 = scmp.le.s32.totalorder 2, %s18
      // Predicated region
      $region57: #{tpu_custom_call.1} parent=5 // pred_check
        %p1133 = pneg %p1132
      $region58: #{tpu_custom_call.1} parent=5 // pred_check_branch
        %1135 = sbr.rel (%p1133) target = $region60
      $region59: #{tpu_custom_call.1} parent=5 // pred_region
        %s1136 = ssub.s32 %s18, 2
        // Predicated region
        $region61: #{tpu_custom_call.1} parent=59 // pred_check
          %p1137 = pneg %p136
        $region62: #{tpu_custom_call.1} parent=59 // pred_check_branch
          %1139 = sbr.rel (%p1137) target = $region64
        $region63: #{tpu_custom_call.1} parent=59 // pred_region
          %s1140 = sand.u32 %s121, 1
          %s1141 = scalar_lea.sflag [#allocation4], %s1140
          %s1142 = sand.u32 %s121, 1
          %s1143 = smul.addr %s1142, 128
          %s1144 = scalar_lea.vmem [#allocation10], %s1143
          %1145 = dma.done %s1141, 2048
        $region64: #{tpu_custom_call.1} parent=59 // pred_fallthru
          _
      $region60: #{tpu_custom_call.1} parent=5 // pred_fallthru
        _
    $region6: #{tpu_custom_call.1} parent=1 // loop_footer
      %s22 = sadd.s32 1, %s18
    $region7: #{tpu_custom_call.1} parent=1 // loop_footer_branch
      %17 = sbr.rel target = $region3
    $region8: #{tpu_custom_call.1} parent=1 // loop_exit
      _
    %1146 = vsyncpa [#allocation3], 1
    %s1147 = scalar_lea.sflag [#allocation3], 1
    %1148 = vsyncpa %s1147, 1
    %1149 = vsyncpa [#allocation6], 1
    %1150 = vsyncpa [#allocation9], 1
    %1151 = vsyncpa [#allocation4], 1
    %s1152 = scalar_lea.sflag [#allocation4], 1
    %1153 = vsyncpa %s1152, 1

</llo_original>
